<compile_context>
chip_gen: v6e
topology: v6e:2x2x1
jax: 0.10.0
libtpu: 0.0.40
codegen_flags: <defaults>
</compile_context>

<pallas_src>
import jax
import jax.numpy as jnp
from jax import lax
from jax.experimental import pallas as pl
from jax.experimental.pallas import tpu as pltpu


def _lstm_dense_kernel(x_ref, wih_ref, whh_ref, b_ref, wd_ref, bd_ref,
                       out_ref):
    """myLSTM forward for the last d1 row, in one kernel invocation.

    x_ref  : (T, I)   bf16  inputs of the LAST d1 (LSTM batch) row
    wih_ref: (I, 4H)  bf16  transposed weight_ih
    whh_ref: (H, 4H)  bf16  transposed weight_hh
    b_ref  : (1, 4H)  f32   b_ih + b_hh
    wd_ref : (H, H)   bf16  transposed dense weight
    bd_ref : (1, H)   f32   dense bias
    out_ref: (T, H)   f32   final output
    """
    T, _ = x_ref.shape
    H = whh_ref.shape[0]

    # ---- Phase 1: input projection for all T steps in one MXU call
    #      (bf16 x bf16 operands, f32 accumulate). No in-kernel reshape.
    gates_x = (jnp.dot(x_ref[...], wih_ref[...],
                       preferred_element_type=jnp.float32)
               + b_ref[...])                                   # (T, 4H) f32

    whh = whh_ref[...]                                         # (H, 4H) bf16

    # Hoisted lane constants: cell-gate (g) columns are [2H, 3H).
    lane = lax.broadcasted_iota(jnp.int32, (1, 4 * H), 1)
    cell_cols = (lane >= 2 * H) & (lane < 3 * H)
    g_prescale = jnp.where(cell_cols, 2.0, 1.0)                # scale g by 2

    # Sublane-index mask used to scatter h_t into the (T, H) register slab.
    row_idx = lax.broadcasted_iota(jnp.int32, (T, H), 0)

    h = jnp.zeros((1, H), jnp.float32)
    c = jnp.zeros((1, H), jnp.float32)
    h_stack = jnp.zeros((T, H), jnp.float32)

    # ---- Phase 2: serial recurrence, fully unrolled (T is small & static).
    # TODO(synk): for large T, switch to lax.fori_loop + VMEM scratch rows and
    # a T-tiled "arbitrary" grid axis carrying h/c in scratch (bounds vreg
    # pressure and the gates_x slab; matters on v7x's 64 MiB VMEM).
    for t in range(T):
        # Accumulator-last form: dot result + resident gates row.
        gates = (jnp.dot(h.astype(jnp.bfloat16), whh,
                         preferred_element_type=jnp.float32)
                 + gates_x[t:t + 1, :])                        # (1, 4H)

        # Single full-width sigmoid (one EUP push); tanh(g) = 2*sigmoid(2g)-1
        # recovered with the hoisted cell-column mask (VPU filler).
        sig = jax.nn.sigmoid(gates * g_prescale)
        act = jnp.where(cell_cols, 2.0 * sig - 1.0, sig)       # (1, 4H)

        # PyTorch LSTM gate order: input, forget, cell(g), output.
        i_g = act[:, 0 * H:1 * H]
        f_g = act[:, 1 * H:2 * H]
        g_g = act[:, 2 * H:3 * H]
        o_g = act[:, 3 * H:4 * H]

        c = f_g * c + i_g * g_g
        h = o_g * jnp.tanh(c)                                  # 2nd EUP push

        # Scatter h_t into row t of the register-resident (T, H) slab.
        h_stack = jnp.where(row_idx == t, h, h_stack)

    # ---- Phase 3: one dense matmul + a single full-block store.
    out_ref[...] = (jnp.dot(h_stack.astype(jnp.bfloat16), wd_ref[...],
                            preferred_element_type=jnp.float32)
                    + bd_ref[...])


def my_lstm_forward(x, params):
    """Forward pass of myLSTM. x: (d0, d1, input_size) -> (d0, H)."""
    T, B, I = x.shape
    H = params["w_hh"].shape[1]                                # w_hh: (4H, H)

    # output[:, -1, :] only consumes the hidden state of the LAST d1 row, and
    # LSTM batch rows are independent -> run the recurrence for that row only.
    x_last = x[:, B - 1, :].astype(jnp.bfloat16)               # (T, I)

    wih_t = params["w_ih"].T.astype(jnp.bfloat16)              # (I, 4H)
    whh_t = params["w_hh"].T.astype(jnp.bfloat16)              # (H, 4H)
    b = (params["b_ih"] + params["b_hh"]).reshape(1, 4 * H).astype(jnp.float32)
    wd_t = params["w_dense"].T.astype(jnp.bfloat16)            # (H, H)
    bd = params["b_dense"].reshape(1, H).astype(jnp.float32)

    vmem = pl.BlockSpec(memory_space=pltpu.MemorySpace.VMEM)
    return pl.pallas_call(
        _lstm_dense_kernel,
        out_shape=jax.ShapeDtypeStruct((T, H), jnp.float32),
        in_specs=[vmem] * 6,
        out_specs=vmem,
    )(x_last, wih_t, whh_t, b, wd_t, bd)


def my_lstm_reference(x, params):
    """Pure-JAX reference replicating the PyTorch forward (full LSTM batch,
    then the [:, -1, :] slice). Matmul operands are rounded to bf16 with f32
    accumulation — the same numerics as the kernel's MXU path (and TPU's
    default f32 matmul precision); all other math stays f32."""
    T, B, I = x.shape
    H = params["w_hh"].shape[1]

    def bdot(a, w):
        return jnp.dot(a.astype(jnp.bfloat16), w.astype(jnp.bfloat16),
                       preferred_element_type=jnp.float32)

    wih_t = params["w_ih"].T
    whh_t = params["w_hh"].T
    b = params["b_ih"] + params["b_hh"]

    def step(carry, x_t):
        h, c = carry
        gates = bdot(x_t, wih_t) + bdot(h, whh_t) + b
        i_g = jax.nn.sigmoid(gates[:, 0 * H:1 * H])
        f_g = jax.nn.sigmoid(gates[:, 1 * H:2 * H])
        g_g = jnp.tanh(gates[:, 2 * H:3 * H])
        o_g = jax.nn.sigmoid(gates[:, 3 * H:4 * H])
        c = f_g * c + i_g * g_g
        h = o_g * jnp.tanh(c)
        return (h, c), h

    h0 = jnp.zeros((B, H), jnp.float32)
    c0 = jnp.zeros((B, H), jnp.float32)
    _, hs = lax.scan(step, (h0, c0), x)          # hs: (T, B, H)
    out = hs[:, -1, :]                           # (T, H)
    return bdot(out, params["w_dense"].T) + params["b_dense"]


def init_params(key, input_size, hidden_dim):
    """Deterministic init matching PyTorch parameter shapes (uniform +-1/sqrt(H))."""
    k = jax.random.split(key, 6)
    s = 1.0 / (hidden_dim ** 0.5)
    u = lambda kk, shape: jax.random.uniform(kk, shape, jnp.float32, -s, s)
    return {
        "w_ih": u(k[0], (4 * hidden_dim, input_size)),
        "w_hh": u(k[1], (4 * hidden_dim, hidden_dim)),
        "b_ih": u(k[2], (4 * hidden_dim,)),
        "b_hh": u(k[3], (4 * hidden_dim,)),
        "w_dense": u(k[4], (hidden_dim, hidden_dim)),
        "b_dense": u(k[5], (hidden_dim,)),
    }


if __name__ == "__main__":
    D0, D1, INPUT_SIZE, HIDDEN = 8, 4, 16, 32   # x: (d0, d1, input_size)

    key = jax.random.PRNGKey(0)
    kx, kp = jax.random.split(key)
    x = jax.random.normal(kx, (D0, D1, INPUT_SIZE), jnp.float32)
    params = init_params(kp, INPUT_SIZE, HIDDEN)

    out = jax.block_until_ready(my_lstm_forward(x, params))
    ref = jax.block_until_ready(my_lstm_reference(x, params))

    assert out.shape == (D0, HIDDEN), out.shape
    # bf16-operand / f32-accumulate matmuls in both paths; residual diffs come
    # only from the tanh(g)=2*sigmoid(2g)-1 rewrite and add ordering.
    assert jnp.allclose(out, ref, atol=1e-3, rtol=1e-3), \
        f"max err {jnp.max(jnp.abs(out - ref))}"

    print("KERNEL_OK")
</pallas_src>

<mosaic_0001>
module attributes {stable_mosaic.version = 11 : i64} {
  func.func @_lstm_dense_kernel(%arg0: memref<8x16xbf16, #tpu.memory_space<vmem>>, %arg1: memref<16x128xbf16, #tpu.memory_space<vmem>>, %arg2: memref<32x128xbf16, #tpu.memory_space<vmem>>, %arg3: memref<1x128xf32, #tpu.memory_space<vmem>>, %arg4: memref<32x32xbf16, #tpu.memory_space<vmem>>, %arg5: memref<1x32xf32, #tpu.memory_space<vmem>>, %arg6: memref<8x32xf32, #tpu.memory_space<vmem>>) attributes {dimension_semantics = [], scalar_prefetch = 0 : i64, scratch_operands = 0 : i64, tpu.core_type = #tpu.core_type<tc>} {
    %c0 = arith.constant 0 : index
    %c0_0 = arith.constant 0 : index
    %0 = vector.load %arg0[%c0, %c0_0] : memref<8x16xbf16, #tpu.memory_space<vmem>>, vector<8x16xbf16>
    %c0_1 = arith.constant 0 : index
    %c0_2 = arith.constant 0 : index
    %1 = vector.load %arg1[%c0_1, %c0_2] : memref<16x128xbf16, #tpu.memory_space<vmem>>, vector<16x128xbf16>
    %cst = arith.constant dense<0.000000e+00> : vector<8x128xf32>
    %2 = tpu.matmul %0, %1, %cst {dimension_numbers = #tpu.dot_dimension_numbers<[1], [0], [0], [1], [0, 0, 1, 1], [], []>} : vector<8x16xbf16>, vector<16x128xbf16>, vector<8x128xf32> -> vector<8x128xf32>
    %c0_3 = arith.constant 0 : index
    %c0_4 = arith.constant 0 : index
    %3 = vector.load %arg3[%c0_3, %c0_4] : memref<1x128xf32, #tpu.memory_space<vmem>>, vector<1x128xf32>
    %4 = vector.broadcast %3 : vector<1x128xf32> to vector<8x128xf32>
    %5 = arith.addf %2, %4 : vector<8x128xf32>
    %c0_5 = arith.constant 0 : index
    %c0_6 = arith.constant 0 : index
    %6 = vector.load %arg2[%c0_5, %c0_6] : memref<32x128xbf16, #tpu.memory_space<vmem>>, vector<32x128xbf16>
    %7 = tpu.iota {dimensions = array<i32: 1>} : vector<1x128xi32>
    %c64_i32 = arith.constant 64 : i32
    %8 = vector.broadcast %c64_i32 : i32 to vector<1x128xi32>
    %9 = arith.cmpi sge, %7, %8 : vector<1x128xi32>
    %c96_i32 = arith.constant 96 : i32
    %10 = vector.broadcast %c96_i32 : i32 to vector<1x128xi32>
    %11 = arith.cmpi slt, %7, %10 : vector<1x128xi32>
    %12 = arith.andi %9, %11 : vector<1x128xi1>
    %cst_7 = arith.constant 2.000000e+00 : f32
    %cst_8 = arith.constant 1.000000e+00 : f32
    %13 = vector.broadcast %cst_7 : f32 to vector<1x128xf32>
    %14 = vector.broadcast %cst_8 : f32 to vector<1x128xf32>
    %15 = arith.select %12, %13, %14 : vector<1x128xi1>, vector<1x128xf32>
    %16 = tpu.iota {dimensions = array<i32: 0>} : vector<8x32xi32>
    %cst_9 = arith.constant 0.000000e+00 : f32
    %17 = vector.broadcast %cst_9 : f32 to vector<1x32xf32>
    %cst_10 = arith.constant 0.000000e+00 : f32
    %18 = vector.broadcast %cst_10 : f32 to vector<1x32xf32>
    %cst_11 = arith.constant 0.000000e+00 : f32
    %19 = vector.broadcast %cst_11 : f32 to vector<8x32xf32>
    %20 = arith.truncf %17 : vector<1x32xf32> to vector<1x32xbf16>
    %cst_12 = arith.constant dense<0.000000e+00> : vector<1x128xf32>
    %21 = tpu.matmul %20, %6, %cst_12 {dimension_numbers = #tpu.dot_dimension_numbers<[1], [0], [0], [1], [0, 0, 1, 1], [], []>} : vector<1x32xbf16>, vector<32x128xbf16>, vector<1x128xf32> -> vector<1x128xf32>
    %22 = vector.extract_strided_slice %5 {offsets = [0, 0], sizes = [1, 128], strides = [1, 1]} : vector<8x128xf32> to vector<1x128xf32>
    %23 = arith.addf %21, %22 : vector<1x128xf32>
    %24 = arith.mulf %23, %15 : vector<1x128xf32>
    %25 = arith.negf %24 : vector<1x128xf32>
    %26 = math.exp %25 : vector<1x128xf32>
    %cst_13 = arith.constant 1.000000e+00 : f32
    %27 = vector.broadcast %cst_13 : f32 to vector<1x128xf32>
    %28 = arith.addf %27, %26 : vector<1x128xf32>
    %29 = arith.divf %27, %28 : vector<1x128xf32>
    %cst_14 = arith.constant 2.000000e+00 : f32
    %30 = vector.broadcast %cst_14 : f32 to vector<1x128xf32>
    %31 = arith.mulf %30, %29 : vector<1x128xf32>
    %cst_15 = arith.constant 1.000000e+00 : f32
    %32 = vector.broadcast %cst_15 : f32 to vector<1x128xf32>
    %33 = arith.subf %31, %32 : vector<1x128xf32>
    %34 = arith.select %12, %33, %29 : vector<1x128xi1>, vector<1x128xf32>
    %35 = vector.extract_strided_slice %34 {offsets = [0, 0], sizes = [1, 32], strides = [1, 1]} : vector<1x128xf32> to vector<1x32xf32>
    %36 = vector.extract_strided_slice %34 {offsets = [0, 32], sizes = [1, 32], strides = [1, 1]} : vector<1x128xf32> to vector<1x32xf32>
    %37 = vector.extract_strided_slice %34 {offsets = [0, 64], sizes = [1, 32], strides = [1, 1]} : vector<1x128xf32> to vector<1x32xf32>
    %38 = vector.extract_strided_slice %34 {offsets = [0, 96], sizes = [1, 32], strides = [1, 1]} : vector<1x128xf32> to vector<1x32xf32>
    %39 = arith.mulf %36, %18 : vector<1x32xf32>
    %40 = arith.mulf %35, %37 : vector<1x32xf32>
    %41 = arith.addf %39, %40 : vector<1x32xf32>
    %42 = math.tanh %41 : vector<1x32xf32>
    %43 = arith.mulf %38, %42 : vector<1x32xf32>
    %c0_i32 = arith.constant 0 : i32
    %44 = vector.broadcast %c0_i32 : i32 to vector<8x32xi32>
    %45 = arith.cmpi eq, %16, %44 : vector<8x32xi32>
    %46 = vector.shape_cast %43 : vector<1x32xf32> to vector<1x32xf32>
    %47 = vector.broadcast %46 : vector<1x32xf32> to vector<8x32xf32>
    %48 = arith.select %45, %47, %19 : vector<8x32xi1>, vector<8x32xf32>
    %49 = arith.truncf %43 : vector<1x32xf32> to vector<1x32xbf16>
    %cst_16 = arith.constant dense<0.000000e+00> : vector<1x128xf32>
    %50 = tpu.matmul %49, %6, %cst_16 {dimension_numbers = #tpu.dot_dimension_numbers<[1], [0], [0], [1], [0, 0, 1, 1], [], []>} : vector<1x32xbf16>, vector<32x128xbf16>, vector<1x128xf32> -> vector<1x128xf32>
    %51 = vector.extract_strided_slice %5 {offsets = [1, 0], sizes = [1, 128], strides = [1, 1]} : vector<8x128xf32> to vector<1x128xf32>
    %52 = arith.addf %50, %51 : vector<1x128xf32>
    %53 = arith.mulf %52, %15 : vector<1x128xf32>
    %54 = arith.negf %53 : vector<1x128xf32>
    %55 = math.exp %54 : vector<1x128xf32>
    %cst_17 = arith.constant 1.000000e+00 : f32
    %56 = vector.broadcast %cst_17 : f32 to vector<1x128xf32>
    %57 = arith.addf %56, %55 : vector<1x128xf32>
    %58 = arith.divf %56, %57 : vector<1x128xf32>
    %cst_18 = arith.constant 2.000000e+00 : f32
    %59 = vector.broadcast %cst_18 : f32 to vector<1x128xf32>
    %60 = arith.mulf %59, %58 : vector<1x128xf32>
    %cst_19 = arith.constant 1.000000e+00 : f32
    %61 = vector.broadcast %cst_19 : f32 to vector<1x128xf32>
    %62 = arith.subf %60, %61 : vector<1x128xf32>
    %63 = arith.select %12, %62, %58 : vector<1x128xi1>, vector<1x128xf32>
    %64 = vector.extract_strided_slice %63 {offsets = [0, 0], sizes = [1, 32], strides = [1, 1]} : vector<1x128xf32> to vector<1x32xf32>
    %65 = vector.extract_strided_slice %63 {offsets = [0, 32], sizes = [1, 32], strides = [1, 1]} : vector<1x128xf32> to vector<1x32xf32>
    %66 = vector.extract_strided_slice %63 {offsets = [0, 64], sizes = [1, 32], strides = [1, 1]} : vector<1x128xf32> to vector<1x32xf32>
    %67 = vector.extract_strided_slice %63 {offsets = [0, 96], sizes = [1, 32], strides = [1, 1]} : vector<1x128xf32> to vector<1x32xf32>
    %68 = arith.mulf %65, %41 : vector<1x32xf32>
    %69 = arith.mulf %64, %66 : vector<1x32xf32>
    %70 = arith.addf %68, %69 : vector<1x32xf32>
    %71 = math.tanh %70 : vector<1x32xf32>
    %72 = arith.mulf %67, %71 : vector<1x32xf32>
    %c1_i32 = arith.constant 1 : i32
    %73 = vector.broadcast %c1_i32 : i32 to vector<8x32xi32>
    %74 = arith.cmpi eq, %16, %73 : vector<8x32xi32>
    %75 = vector.shape_cast %72 : vector<1x32xf32> to vector<1x32xf32>
    %76 = vector.broadcast %75 : vector<1x32xf32> to vector<8x32xf32>
    %77 = arith.select %74, %76, %48 : vector<8x32xi1>, vector<8x32xf32>
    %78 = arith.truncf %72 : vector<1x32xf32> to vector<1x32xbf16>
    %cst_20 = arith.constant dense<0.000000e+00> : vector<1x128xf32>
    %79 = tpu.matmul %78, %6, %cst_20 {dimension_numbers = #tpu.dot_dimension_numbers<[1], [0], [0], [1], [0, 0, 1, 1], [], []>} : vector<1x32xbf16>, vector<32x128xbf16>, vector<1x128xf32> -> vector<1x128xf32>
    %80 = vector.extract_strided_slice %5 {offsets = [2, 0], sizes = [1, 128], strides = [1, 1]} : vector<8x128xf32> to vector<1x128xf32>
    %81 = arith.addf %79, %80 : vector<1x128xf32>
    %82 = arith.mulf %81, %15 : vector<1x128xf32>
    %83 = arith.negf %82 : vector<1x128xf32>
    %84 = math.exp %83 : vector<1x128xf32>
    %cst_21 = arith.constant 1.000000e+00 : f32
    %85 = vector.broadcast %cst_21 : f32 to vector<1x128xf32>
    %86 = arith.addf %85, %84 : vector<1x128xf32>
    %87 = arith.divf %85, %86 : vector<1x128xf32>
    %cst_22 = arith.constant 2.000000e+00 : f32
    %88 = vector.broadcast %cst_22 : f32 to vector<1x128xf32>
    %89 = arith.mulf %88, %87 : vector<1x128xf32>
    %cst_23 = arith.constant 1.000000e+00 : f32
    %90 = vector.broadcast %cst_23 : f32 to vector<1x128xf32>
    %91 = arith.subf %89, %90 : vector<1x128xf32>
    %92 = arith.select %12, %91, %87 : vector<1x128xi1>, vector<1x128xf32>
    %93 = vector.extract_strided_slice %92 {offsets = [0, 0], sizes = [1, 32], strides = [1, 1]} : vector<1x128xf32> to vector<1x32xf32>
    %94 = vector.extract_strided_slice %92 {offsets = [0, 32], sizes = [1, 32], strides = [1, 1]} : vector<1x128xf32> to vector<1x32xf32>
    %95 = vector.extract_strided_slice %92 {offsets = [0, 64], sizes = [1, 32], strides = [1, 1]} : vector<1x128xf32> to vector<1x32xf32>
    %96 = vector.extract_strided_slice %92 {offsets = [0, 96], sizes = [1, 32], strides = [1, 1]} : vector<1x128xf32> to vector<1x32xf32>
    %97 = arith.mulf %94, %70 : vector<1x32xf32>
    %98 = arith.mulf %93, %95 : vector<1x32xf32>
    %99 = arith.addf %97, %98 : vector<1x32xf32>
    %100 = math.tanh %99 : vector<1x32xf32>
    %101 = arith.mulf %96, %100 : vector<1x32xf32>
    %c2_i32 = arith.constant 2 : i32
    %102 = vector.broadcast %c2_i32 : i32 to vector<8x32xi32>
    %103 = arith.cmpi eq, %16, %102 : vector<8x32xi32>
    %104 = vector.shape_cast %101 : vector<1x32xf32> to vector<1x32xf32>
    %105 = vector.broadcast %104 : vector<1x32xf32> to vector<8x32xf32>
    %106 = arith.select %103, %105, %77 : vector<8x32xi1>, vector<8x32xf32>
    %107 = arith.truncf %101 : vector<1x32xf32> to vector<1x32xbf16>
    %cst_24 = arith.constant dense<0.000000e+00> : vector<1x128xf32>
    %108 = tpu.matmul %107, %6, %cst_24 {dimension_numbers = #tpu.dot_dimension_numbers<[1], [0], [0], [1], [0, 0, 1, 1], [], []>} : vector<1x32xbf16>, vector<32x128xbf16>, vector<1x128xf32> -> vector<1x128xf32>
    %109 = vector.extract_strided_slice %5 {offsets = [3, 0], sizes = [1, 128], strides = [1, 1]} : vector<8x128xf32> to vector<1x128xf32>
    %110 = arith.addf %108, %109 : vector<1x128xf32>
    %111 = arith.mulf %110, %15 : vector<1x128xf32>
    %112 = arith.negf %111 : vector<1x128xf32>
    %113 = math.exp %112 : vector<1x128xf32>
    %cst_25 = arith.constant 1.000000e+00 : f32
    %114 = vector.broadcast %cst_25 : f32 to vector<1x128xf32>
    %115 = arith.addf %114, %113 : vector<1x128xf32>
    %116 = arith.divf %114, %115 : vector<1x128xf32>
    %cst_26 = arith.constant 2.000000e+00 : f32
    %117 = vector.broadcast %cst_26 : f32 to vector<1x128xf32>
    %118 = arith.mulf %117, %116 : vector<1x128xf32>
    %cst_27 = arith.constant 1.000000e+00 : f32
    %119 = vector.broadcast %cst_27 : f32 to vector<1x128xf32>
    %120 = arith.subf %118, %119 : vector<1x128xf32>
    %121 = arith.select %12, %120, %116 : vector<1x128xi1>, vector<1x128xf32>
    %122 = vector.extract_strided_slice %121 {offsets = [0, 0], sizes = [1, 32], strides = [1, 1]} : vector<1x128xf32> to vector<1x32xf32>
    %123 = vector.extract_strided_slice %121 {offsets = [0, 32], sizes = [1, 32], strides = [1, 1]} : vector<1x128xf32> to vector<1x32xf32>
    %124 = vector.extract_strided_slice %121 {offsets = [0, 64], sizes = [1, 32], strides = [1, 1]} : vector<1x128xf32> to vector<1x32xf32>
    %125 = vector.extract_strided_slice %121 {offsets = [0, 96], sizes = [1, 32], strides = [1, 1]} : vector<1x128xf32> to vector<1x32xf32>
    %126 = arith.mulf %123, %99 : vector<1x32xf32>
    %127 = arith.mulf %122, %124 : vector<1x32xf32>
    %128 = arith.addf %126, %127 : vector<1x32xf32>
    %129 = math.tanh %128 : vector<1x32xf32>
    %130 = arith.mulf %125, %129 : vector<1x32xf32>
    %c3_i32 = arith.constant 3 : i32
    %131 = vector.broadcast %c3_i32 : i32 to vector<8x32xi32>
    %132 = arith.cmpi eq, %16, %131 : vector<8x32xi32>
    %133 = vector.shape_cast %130 : vector<1x32xf32> to vector<1x32xf32>
    %134 = vector.broadcast %133 : vector<1x32xf32> to vector<8x32xf32>
    %135 = arith.select %132, %134, %106 : vector<8x32xi1>, vector<8x32xf32>
    %136 = arith.truncf %130 : vector<1x32xf32> to vector<1x32xbf16>
    %cst_28 = arith.constant dense<0.000000e+00> : vector<1x128xf32>
    %137 = tpu.matmul %136, %6, %cst_28 {dimension_numbers = #tpu.dot_dimension_numbers<[1], [0], [0], [1], [0, 0, 1, 1], [], []>} : vector<1x32xbf16>, vector<32x128xbf16>, vector<1x128xf32> -> vector<1x128xf32>
    %138 = vector.extract_strided_slice %5 {offsets = [4, 0], sizes = [1, 128], strides = [1, 1]} : vector<8x128xf32> to vector<1x128xf32>
    %139 = arith.addf %137, %138 : vector<1x128xf32>
    %140 = arith.mulf %139, %15 : vector<1x128xf32>
    %141 = arith.negf %140 : vector<1x128xf32>
    %142 = math.exp %141 : vector<1x128xf32>
    %cst_29 = arith.constant 1.000000e+00 : f32
    %143 = vector.broadcast %cst_29 : f32 to vector<1x128xf32>
    %144 = arith.addf %143, %142 : vector<1x128xf32>
    %145 = arith.divf %143, %144 : vector<1x128xf32>
    %cst_30 = arith.constant 2.000000e+00 : f32
    %146 = vector.broadcast %cst_30 : f32 to vector<1x128xf32>
    %147 = arith.mulf %146, %145 : vector<1x128xf32>
    %cst_31 = arith.constant 1.000000e+00 : f32
    %148 = vector.broadcast %cst_31 : f32 to vector<1x128xf32>
    %149 = arith.subf %147, %148 : vector<1x128xf32>
    %150 = arith.select %12, %149, %145 : vector<1x128xi1>, vector<1x128xf32>
    %151 = vector.extract_strided_slice %150 {offsets = [0, 0], sizes = [1, 32], strides = [1, 1]} : vector<1x128xf32> to vector<1x32xf32>
    %152 = vector.extract_strided_slice %150 {offsets = [0, 32], sizes = [1, 32], strides = [1, 1]} : vector<1x128xf32> to vector<1x32xf32>
    %153 = vector.extract_strided_slice %150 {offsets = [0, 64], sizes = [1, 32], strides = [1, 1]} : vector<1x128xf32> to vector<1x32xf32>
    %154 = vector.extract_strided_slice %150 {offsets = [0, 96], sizes = [1, 32], strides = [1, 1]} : vector<1x128xf32> to vector<1x32xf32>
    %155 = arith.mulf %152, %128 : vector<1x32xf32>
    %156 = arith.mulf %151, %153 : vector<1x32xf32>
    %157 = arith.addf %155, %156 : vector<1x32xf32>
    %158 = math.tanh %157 : vector<1x32xf32>
    %159 = arith.mulf %154, %158 : vector<1x32xf32>
    %c4_i32 = arith.constant 4 : i32
    %160 = vector.broadcast %c4_i32 : i32 to vector<8x32xi32>
    %161 = arith.cmpi eq, %16, %160 : vector<8x32xi32>
    %162 = vector.shape_cast %159 : vector<1x32xf32> to vector<1x32xf32>
    %163 = vector.broadcast %162 : vector<1x32xf32> to vector<8x32xf32>
    %164 = arith.select %161, %163, %135 : vector<8x32xi1>, vector<8x32xf32>
    %165 = arith.truncf %159 : vector<1x32xf32> to vector<1x32xbf16>
    %cst_32 = arith.constant dense<0.000000e+00> : vector<1x128xf32>
    %166 = tpu.matmul %165, %6, %cst_32 {dimension_numbers = #tpu.dot_dimension_numbers<[1], [0], [0], [1], [0, 0, 1, 1], [], []>} : vector<1x32xbf16>, vector<32x128xbf16>, vector<1x128xf32> -> vector<1x128xf32>
    %167 = vector.extract_strided_slice %5 {offsets = [5, 0], sizes = [1, 128], strides = [1, 1]} : vector<8x128xf32> to vector<1x128xf32>
    %168 = arith.addf %166, %167 : vector<1x128xf32>
    %169 = arith.mulf %168, %15 : vector<1x128xf32>
    %170 = arith.negf %169 : vector<1x128xf32>
    %171 = math.exp %170 : vector<1x128xf32>
    %cst_33 = arith.constant 1.000000e+00 : f32
    %172 = vector.broadcast %cst_33 : f32 to vector<1x128xf32>
    %173 = arith.addf %172, %171 : vector<1x128xf32>
    %174 = arith.divf %172, %173 : vector<1x128xf32>
    %cst_34 = arith.constant 2.000000e+00 : f32
    %175 = vector.broadcast %cst_34 : f32 to vector<1x128xf32>
    %176 = arith.mulf %175, %174 : vector<1x128xf32>
    %cst_35 = arith.constant 1.000000e+00 : f32
    %177 = vector.broadcast %cst_35 : f32 to vector<1x128xf32>
    %178 = arith.subf %176, %177 : vector<1x128xf32>
    %179 = arith.select %12, %178, %174 : vector<1x128xi1>, vector<1x128xf32>
    %180 = vector.extract_strided_slice %179 {offsets = [0, 0], sizes = [1, 32], strides = [1, 1]} : vector<1x128xf32> to vector<1x32xf32>
    %181 = vector.extract_strided_slice %179 {offsets = [0, 32], sizes = [1, 32], strides = [1, 1]} : vector<1x128xf32> to vector<1x32xf32>
    %182 = vector.extract_strided_slice %179 {offsets = [0, 64], sizes = [1, 32], strides = [1, 1]} : vector<1x128xf32> to vector<1x32xf32>
    %183 = vector.extract_strided_slice %179 {offsets = [0, 96], sizes = [1, 32], strides = [1, 1]} : vector<1x128xf32> to vector<1x32xf32>
    %184 = arith.mulf %181, %157 : vector<1x32xf32>
    %185 = arith.mulf %180, %182 : vector<1x32xf32>
    %186 = arith.addf %184, %185 : vector<1x32xf32>
    %187 = math.tanh %186 : vector<1x32xf32>
    %188 = arith.mulf %183, %187 : vector<1x32xf32>
    %c5_i32 = arith.constant 5 : i32
    %189 = vector.broadcast %c5_i32 : i32 to vector<8x32xi32>
    %190 = arith.cmpi eq, %16, %189 : vector<8x32xi32>
    %191 = vector.shape_cast %188 : vector<1x32xf32> to vector<1x32xf32>
    %192 = vector.broadcast %191 : vector<1x32xf32> to vector<8x32xf32>
    %193 = arith.select %190, %192, %164 : vector<8x32xi1>, vector<8x32xf32>
    %194 = arith.truncf %188 : vector<1x32xf32> to vector<1x32xbf16>
    %cst_36 = arith.constant dense<0.000000e+00> : vector<1x128xf32>
    %195 = tpu.matmul %194, %6, %cst_36 {dimension_numbers = #tpu.dot_dimension_numbers<[1], [0], [0], [1], [0, 0, 1, 1], [], []>} : vector<1x32xbf16>, vector<32x128xbf16>, vector<1x128xf32> -> vector<1x128xf32>
    %196 = vector.extract_strided_slice %5 {offsets = [6, 0], sizes = [1, 128], strides = [1, 1]} : vector<8x128xf32> to vector<1x128xf32>
    %197 = arith.addf %195, %196 : vector<1x128xf32>
    %198 = arith.mulf %197, %15 : vector<1x128xf32>
    %199 = arith.negf %198 : vector<1x128xf32>
    %200 = math.exp %199 : vector<1x128xf32>
    %cst_37 = arith.constant 1.000000e+00 : f32
    %201 = vector.broadcast %cst_37 : f32 to vector<1x128xf32>
    %202 = arith.addf %201, %200 : vector<1x128xf32>
    %203 = arith.divf %201, %202 : vector<1x128xf32>
    %cst_38 = arith.constant 2.000000e+00 : f32
    %204 = vector.broadcast %cst_38 : f32 to vector<1x128xf32>
    %205 = arith.mulf %204, %203 : vector<1x128xf32>
    %cst_39 = arith.constant 1.000000e+00 : f32
    %206 = vector.broadcast %cst_39 : f32 to vector<1x128xf32>
    %207 = arith.subf %205, %206 : vector<1x128xf32>
    %208 = arith.select %12, %207, %203 : vector<1x128xi1>, vector<1x128xf32>
    %209 = vector.extract_strided_slice %208 {offsets = [0, 0], sizes = [1, 32], strides = [1, 1]} : vector<1x128xf32> to vector<1x32xf32>
    %210 = vector.extract_strided_slice %208 {offsets = [0, 32], sizes = [1, 32], strides = [1, 1]} : vector<1x128xf32> to vector<1x32xf32>
    %211 = vector.extract_strided_slice %208 {offsets = [0, 64], sizes = [1, 32], strides = [1, 1]} : vector<1x128xf32> to vector<1x32xf32>
    %212 = vector.extract_strided_slice %208 {offsets = [0, 96], sizes = [1, 32], strides = [1, 1]} : vector<1x128xf32> to vector<1x32xf32>
    %213 = arith.mulf %210, %186 : vector<1x32xf32>
    %214 = arith.mulf %209, %211 : vector<1x32xf32>
    %215 = arith.addf %213, %214 : vector<1x32xf32>
    %216 = math.tanh %215 : vector<1x32xf32>
    %217 = arith.mulf %212, %216 : vector<1x32xf32>
    %c6_i32 = arith.constant 6 : i32
    %218 = vector.broadcast %c6_i32 : i32 to vector<8x32xi32>
    %219 = arith.cmpi eq, %16, %218 : vector<8x32xi32>
    %220 = vector.shape_cast %217 : vector<1x32xf32> to vector<1x32xf32>
    %221 = vector.broadcast %220 : vector<1x32xf32> to vector<8x32xf32>
    %222 = arith.select %219, %221, %193 : vector<8x32xi1>, vector<8x32xf32>
    %223 = arith.truncf %217 : vector<1x32xf32> to vector<1x32xbf16>
    %cst_40 = arith.constant dense<0.000000e+00> : vector<1x128xf32>
    %224 = tpu.matmul %223, %6, %cst_40 {dimension_numbers = #tpu.dot_dimension_numbers<[1], [0], [0], [1], [0, 0, 1, 1], [], []>} : vector<1x32xbf16>, vector<32x128xbf16>, vector<1x128xf32> -> vector<1x128xf32>
    %225 = vector.extract_strided_slice %5 {offsets = [7, 0], sizes = [1, 128], strides = [1, 1]} : vector<8x128xf32> to vector<1x128xf32>
    %226 = arith.addf %224, %225 : vector<1x128xf32>
    %227 = arith.mulf %226, %15 : vector<1x128xf32>
    %228 = arith.negf %227 : vector<1x128xf32>
    %229 = math.exp %228 : vector<1x128xf32>
    %cst_41 = arith.constant 1.000000e+00 : f32
    %230 = vector.broadcast %cst_41 : f32 to vector<1x128xf32>
    %231 = arith.addf %230, %229 : vector<1x128xf32>
    %232 = arith.divf %230, %231 : vector<1x128xf32>
    %cst_42 = arith.constant 2.000000e+00 : f32
    %233 = vector.broadcast %cst_42 : f32 to vector<1x128xf32>
    %234 = arith.mulf %233, %232 : vector<1x128xf32>
    %cst_43 = arith.constant 1.000000e+00 : f32
    %235 = vector.broadcast %cst_43 : f32 to vector<1x128xf32>
    %236 = arith.subf %234, %235 : vector<1x128xf32>
    %237 = arith.select %12, %236, %232 : vector<1x128xi1>, vector<1x128xf32>
    %238 = vector.extract_strided_slice %237 {offsets = [0, 0], sizes = [1, 32], strides = [1, 1]} : vector<1x128xf32> to vector<1x32xf32>
    %239 = vector.extract_strided_slice %237 {offsets = [0, 32], sizes = [1, 32], strides = [1, 1]} : vector<1x128xf32> to vector<1x32xf32>
    %240 = vector.extract_strided_slice %237 {offsets = [0, 64], sizes = [1, 32], strides = [1, 1]} : vector<1x128xf32> to vector<1x32xf32>
    %241 = vector.extract_strided_slice %237 {offsets = [0, 96], sizes = [1, 32], strides = [1, 1]} : vector<1x128xf32> to vector<1x32xf32>
    %242 = arith.mulf %239, %215 : vector<1x32xf32>
    %243 = arith.mulf %238, %240 : vector<1x32xf32>
    %244 = arith.addf %242, %243 : vector<1x32xf32>
    %245 = math.tanh %244 : vector<1x32xf32>
    %246 = arith.mulf %241, %245 : vector<1x32xf32>
    %c7_i32 = arith.constant 7 : i32
    %247 = vector.broadcast %c7_i32 : i32 to vector<8x32xi32>
    %248 = arith.cmpi eq, %16, %247 : vector<8x32xi32>
    %249 = vector.shape_cast %246 : vector<1x32xf32> to vector<1x32xf32>
    %250 = vector.broadcast %249 : vector<1x32xf32> to vector<8x32xf32>
    %251 = arith.select %248, %250, %222 : vector<8x32xi1>, vector<8x32xf32>
    %252 = arith.truncf %251 : vector<8x32xf32> to vector<8x32xbf16>
    %c0_44 = arith.constant 0 : index
    %c0_45 = arith.constant 0 : index
    %253 = vector.load %arg4[%c0_44, %c0_45] : memref<32x32xbf16, #tpu.memory_space<vmem>>, vector<32x32xbf16>
    %cst_46 = arith.constant dense<0.000000e+00> : vector<8x32xf32>
    %254 = tpu.matmul %252, %253, %cst_46 {dimension_numbers = #tpu.dot_dimension_numbers<[1], [0], [0], [1], [0, 0, 1, 1], [], []>} : vector<8x32xbf16>, vector<32x32xbf16>, vector<8x32xf32> -> vector<8x32xf32>
    %c0_47 = arith.constant 0 : index
    %c0_48 = arith.constant 0 : index
    %255 = vector.load %arg5[%c0_47, %c0_48] : memref<1x32xf32, #tpu.memory_space<vmem>>, vector<1x32xf32>
    %256 = vector.broadcast %255 : vector<1x32xf32> to vector<8x32xf32>
    %257 = arith.addf %254, %256 : vector<8x32xf32>
    %c0_49 = arith.constant 0 : index
    %c0_50 = arith.constant 0 : index
    %258 = vector.load %arg6[%c0_49, %c0_50] : memref<8x32xf32, #tpu.memory_space<vmem>>, vector<8x32xf32>
    tpu.vector_store %arg6[%c0_49, %c0_50], %257 {strides = array<i32>} : memref<8x32xf32, #tpu.memory_space<vmem>>, vector<8x32xf32>,
    return
  }
}

</mosaic_0001>

<llo_original>
// kernel: tpu_custom_call.1
$region0: #{tpu_custom_call.1}
  #allocation0 [shape = 'u32[]', space=smem, size = 0x4, offset = 0x4, fixed_abs, tag = 'smem constant byte address 0x4 - core index']
  #allocation1 [shape = 'u32[144,128]{1,0:T(1,128)}', space=vmem, size = 0x12000, scoped, tag = 'internal scratch']
  %s0 = inlined_call_operand.hbm [shape: bf16[8,16], index: 0, kind: input, shape index: {}]
  %s1 = inlined_call_operand.hbm [shape: bf16[16,128], index: 1, kind: input, shape index: {}]
  %s2 = inlined_call_operand.hbm [shape: bf16[32,128], index: 2, kind: input, shape index: {}]
  %s3 = inlined_call_operand.vmem [shape: f32[1,128], index: 3, kind: input, shape index: {}]
  %s4 = inlined_call_operand.hbm [shape: bf16[32,32], index: 4, kind: input, shape index: {}]
  %s5 = inlined_call_operand.vmem [shape: f32[1,32], index: 5, kind: input, shape index: {}]
  %s6 = inlined_call_operand.hbm [shape: f32[8,32], index: 6, kind: output, shape index: {}]
  %s7 = sld [smem:[#allocation0]]
  $region50: #{tpu_custom_call.1} parent=0
    _
  %s9 = ssub.s32 1, %s7
  %s10 = scalar_select 0, %s9, %s7
  $region1: #{tpu_custom_call.1} parent=0
    #allocation2 [shape = 'u8[2048]{0}', space=vmem, size = 0x800, scoped, tag = 'input window, operand 0, single buffered']
    #allocation3 [shape = 's32[1]{0}', space=sflag, size = 0x4, scoped, tag = 'scoped memory for tpu_custom_call.1']
    #allocation4 [shape = 's32[1]{0}', space=sflag, size = 0x4, scoped, tag = 'scoped memory for tpu_custom_call.1']
    #allocation5 [shape = 'u8[4096]{0}', space=vmem, size = 0x1000, scoped, tag = 'input window, operand 1, single buffered']
    #allocation6 [shape = 's32[1]{0}', space=sflag, size = 0x4, scoped, tag = 'scoped memory for tpu_custom_call.1']
    #allocation7 [shape = 'u8[8192]{0}', space=vmem, size = 0x2000, scoped, tag = 'input window, operand 2, single buffered']
    #allocation8 [shape = 'u8[8192]{0}', space=vmem, size = 0x2000, scoped, tag = 'input window, operand 4, single buffered']
    #allocation9 [shape = 's32[1]{0}', space=sflag, size = 0x4, scoped, tag = 'scoped memory for tpu_custom_call.1']
    #allocation10 [shape = 'u8[4096]{0}', space=vmem, size = 0x1000, scoped, tag = 'output window, operand 0, single buffered']
    %11 = vsyncpa [#allocation3], 0
    %12 = vsyncpa [#allocation6], 0
    %13 = vsyncpa [#allocation9], 0
    %14 = vsyncpa [#allocation4], 0
    // Predicated region
    $region2: #{tpu_custom_call.1} parent=1 // pred_check
      _
    $region3: #{tpu_custom_call.1} parent=1 // pred_check_branch
      %16 = sbr.rel (0) target = $region5
    $region4: #{tpu_custom_call.1} parent=1 // pred_region
      %s18 = ssub.s32 64, 64
      %19 = vsyncadd [#allocation3], %s18
      %s21 = sshll.u32 [#allocation2], 4
      %s22 = int_to_ptr.vmem [resolvable:$true] %s21
      %24 = dma.hbm_to_vmem [thread:$0]  %s0, 64, %s22, [#allocation3]
    $region5: #{tpu_custom_call.1} parent=1 // pred_fallthru
      _
    // Predicated region
    $region6: #{tpu_custom_call.1} parent=1 // pred_check
      _
    $region7: #{tpu_custom_call.1} parent=1 // pred_check_branch
      %26 = sbr.rel (0) target = $region9
    $region8: #{tpu_custom_call.1} parent=1 // pred_region
      %s28 = ssub.s32 128, 128
      %29 = vsyncadd [#allocation6], %s28
      %s30 = sshll.u32 [#allocation5], 4
      %s31 = int_to_ptr.vmem [resolvable:$true] %s30
      %36 = dma.hbm_to_vmem [thread:$0]  %s1, 128, %s31, [#allocation6], 64, 64, 4
    $region9: #{tpu_custom_call.1} parent=1 // pred_fallthru
      _
    // Predicated region
    $region10: #{tpu_custom_call.1} parent=1 // pred_check
      _
    $region11: #{tpu_custom_call.1} parent=1 // pred_check_branch
      %38 = sbr.rel (0) target = $region13
    $region12: #{tpu_custom_call.1} parent=1 // pred_region
      %s40 = ssub.s32 256, 256
      %41 = vsyncadd [#allocation6], %s40
      %s42 = sshll.u32 [#allocation7], 4
      %s43 = int_to_ptr.vmem [resolvable:$true] %s42
      %48 = dma.hbm_to_vmem [thread:$0]  %s2, 256, %s43, [#allocation6], 64, 64, 4
    $region13: #{tpu_custom_call.1} parent=1 // pred_fallthru
      _
    // Predicated region
    $region14: #{tpu_custom_call.1} parent=1 // pred_check
      _
    $region15: #{tpu_custom_call.1} parent=1 // pred_check_branch
      %50 = sbr.rel (0) target = $region17
    $region16: #{tpu_custom_call.1} parent=1 // pred_region
      _
    $region17: #{tpu_custom_call.1} parent=1 // pred_fallthru
      _
    // Predicated region
    $region18: #{tpu_custom_call.1} parent=1 // pred_check
      _
    $region19: #{tpu_custom_call.1} parent=1 // pred_check_branch
      %52 = sbr.rel (0) target = $region21
    $region20: #{tpu_custom_call.1} parent=1 // pred_region
      %s54 = ssub.s32 256, 256
      %55 = vsyncadd [#allocation9], %s54
      %s56 = sshll.u32 [#allocation8], 4
      %s57 = int_to_ptr.vmem [resolvable:$true] %s56
      %62 = dma.hbm_to_vmem [thread:$0]  %s4, 256, %s57, [#allocation9], 64, 64, 4
    $region21: #{tpu_custom_call.1} parent=1 // pred_fallthru
      _
    // Predicated region
    $region22: #{tpu_custom_call.1} parent=1 // pred_check
      _
    $region23: #{tpu_custom_call.1} parent=1 // pred_check_branch
      %64 = sbr.rel (0) target = $region25
    $region24: #{tpu_custom_call.1} parent=1 // pred_region
      _
    $region25: #{tpu_custom_call.1} parent=1 // pred_fallthru
      _
    // Predicated region
    $region26: #{tpu_custom_call.1} parent=1 // pred_check
      _
    $region27: #{tpu_custom_call.1} parent=1 // pred_check_branch
      %66 = sbr.rel (0) target = $region29
    $region28: #{tpu_custom_call.1} parent=1 // pred_region
      %67 = dma.done [#allocation3], 64
    $region29: #{tpu_custom_call.1} parent=1 // pred_fallthru
      _
    // Predicated region
    $region30: #{tpu_custom_call.1} parent=1 // pred_check
      _
    $region31: #{tpu_custom_call.1} parent=1 // pred_check_branch
      %69 = sbr.rel (0) target = $region33
    $region32: #{tpu_custom_call.1} parent=1 // pred_region
      %70 = dma.done [#allocation6], 128
    $region33: #{tpu_custom_call.1} parent=1 // pred_fallthru
      _
    // Predicated region
    $region34: #{tpu_custom_call.1} parent=1 // pred_check
      _
    $region35: #{tpu_custom_call.1} parent=1 // pred_check_branch
      %72 = sbr.rel (0) target = $region37
    $region36: #{tpu_custom_call.1} parent=1 // pred_region
      %73 = dma.done [#allocation6], 256
    $region37: #{tpu_custom_call.1} parent=1 // pred_fallthru
      _
    // Predicated region
    $region38: #{tpu_custom_call.1} parent=1 // pred_check
      _
    $region39: #{tpu_custom_call.1} parent=1 // pred_check_branch
      %75 = sbr.rel (0) target = $region41
    $region40: #{tpu_custom_call.1} parent=1 // pred_region
      %76 = dma.done [#allocation9], 256
    $region41: #{tpu_custom_call.1} parent=1 // pred_fallthru
      _
    %v78 = vld [vmem:[#allocation2] sm:$0xf]
    %v79 = vld [vmem:[#allocation5] sm:$0xf]
    %v80 = vld [vmem:[#allocation5 + $0x4] sm:$0xf]
    %v81 = vld [vmem:[%s3] sm:$0x1]
    %v83 = vlaneseq
    %v84 = vshrl.u32 %v83, 7
    %v85 = vsub.s32 0, %v84
    %v86 = vrot.slane %v81, %v85
    %v90 = vunpack.c.l.b16 %v79
    %v91 = vunpack.c.l.b16 %v80
    %v92 = vpack.c.b16 %v91, %v90
    %vm94 = vcmask 130048
    %v96 = vsel %vm94, %v78, 0
    %98 = vmatprep.subr.bf16.mxu0 0
    %99 = vmatpush1.bf16.msra.mxu0 0
    %100 = vmatprep.subr.bf16.mxu0 0
    %101 = vmatpush1.bf16.msra.mxu0 0
    %102 = vmatprep.subr.bf16.mxu0 0
    %103 = vmatpush1.bf16.msra.mxu0 0
    %104 = vmatprep.subr.bf16.mxu0 0
    %105 = vmatpush1.bf16.msra.mxu0 0
    %106 = vmatprep.subr.bf16.mxu0 0
    %107 = vmatpush1.bf16.msra.mxu0 0
    %108 = vmatprep.subr.bf16.mxu0 0
    %109 = vmatpush1.bf16.msra.mxu0 0
    %110 = vmatprep.subr.bf16.mxu0 0
    %111 = vmatpush1.bf16.msra.mxu0 0
    %112 = vmatprep.subr.bf16.mxu0 0
    %113 = vmatpush1.bf16.msra.mxu0 %v92
    %114 = vmatprep.subr.bf16.mxu0 0
    %115 = vmatpush2.bf16.msra.mxu0 0
    %116 = vmatprep.subr.bf16.mxu0 0
    %117 = vmatpush2.bf16.msra.mxu0 0
    %118 = vmatprep.subr.bf16.mxu0 0
    %119 = vmatpush2.bf16.msra.mxu0 0
    %120 = vmatprep.subr.bf16.mxu0 0
    %121 = vmatpush2.bf16.msra.mxu0 0
    %122 = vmatprep.subr.bf16.mxu0 0
    %123 = vmatpush2.bf16.msra.mxu0 0
    %124 = vmatprep.subr.bf16.mxu0 0
    %125 = vmatpush2.bf16.msra.mxu0 0
    %126 = vmatprep.subr.bf16.mxu0 0
    %127 = vmatpush2.bf16.msra.mxu0 0
    %128 = vmatprep.subr.bf16.mxu0 0
    %129 = vmatpush2.bf16.msra.mxu0 0
    %130 = vmatprep.mubr.bf16.mxu0 0
    %131 = vmatmul.mubr.bf16.gmra.mxu0 %v96
    %v132 = vpop.f32.mrf.mxu0
    %v133 = vadd.f32 %v86, %v132
    %v134 = vpop.f32.mrf.mxu0
    %v135 = vpop.f32.mrf.mxu0
    %v136 = vpop.f32.mrf.mxu0
    %137 = vdwg.mxu0
    %v138 = vld [vmem:[#allocation7] sm:$0xf]
    %v139 = vld [vmem:[#allocation7 + $0x4] sm:$0xf]
    %v140 = vld [vmem:[#allocation7 + $0x8] sm:$0xf]
    %v141 = vld [vmem:[#allocation7 + $0xc] sm:$0xf]
    %v142 = vlaneseq
    %v143 = vand.u32 %v142, 127
    %vm144 = vcmp.ge.s32.totalorder %v143, 64
    %vm145 = vcmp.lt.s32.totalorder %v143, 96
    %vm146 = vmand %vm144, %vm145
    %v147 = vsel %vm146, 2.0, 1.0
    %v148 = vlaneseq
    %v149 = vshrl.u32 %v148, 7
    %v154 = vunpack.c.l.b16 %v138
    %v155 = vunpack.c.l.b16 %v139
    %v156 = vunpack.c.l.b16 %v140
    %v157 = vunpack.c.l.b16 %v141
    %v158 = vpack.c.b16 %v155, %v154
    %v159 = vpack.c.b16 %v157, %v156
    %vm162 = vcmask 261120
    %v164 = vsel %vm162, 0, 0
    %166 = vmatprep.subr.bf16.mxu0 0
    %167 = vmatpush1.bf16.msra.mxu0 0
    %168 = vmatprep.subr.bf16.mxu0 0
    %169 = vmatpush1.bf16.msra.mxu0 0
    %170 = vmatprep.subr.bf16.mxu0 0
    %171 = vmatpush1.bf16.msra.mxu0 0
    %172 = vmatprep.subr.bf16.mxu0 0
    %173 = vmatpush1.bf16.msra.mxu0 0
    %174 = vmatprep.subr.bf16.mxu0 0
    %175 = vmatpush1.bf16.msra.mxu0 0
    %176 = vmatprep.subr.bf16.mxu0 0
    %177 = vmatpush1.bf16.msra.mxu0 0
    %178 = vmatprep.subr.bf16.mxu0 0
    %179 = vmatpush1.bf16.msra.mxu0 %v159
    %180 = vmatprep.subr.bf16.mxu0 0
    %181 = vmatpush1.bf16.msra.mxu0 %v158
    %182 = vmatprep.subr.bf16.mxu0 0
    %183 = vmatpush2.bf16.msra.mxu0 0
    %184 = vmatprep.subr.bf16.mxu0 0
    %185 = vmatpush2.bf16.msra.mxu0 0
    %186 = vmatprep.subr.bf16.mxu0 0
    %187 = vmatpush2.bf16.msra.mxu0 0
    %188 = vmatprep.subr.bf16.mxu0 0
    %189 = vmatpush2.bf16.msra.mxu0 0
    %190 = vmatprep.subr.bf16.mxu0 0
    %191 = vmatpush2.bf16.msra.mxu0 0
    %192 = vmatprep.subr.bf16.mxu0 0
    %193 = vmatpush2.bf16.msra.mxu0 0
    %194 = vmatprep.subr.bf16.mxu0 0
    %195 = vmatpush2.bf16.msra.mxu0 0
    %196 = vmatprep.subr.bf16.mxu0 0
    %197 = vmatpush2.bf16.msra.mxu0 0
    %198 = vmatprep.mubr.bf16.mxu0 0
    %199 = vmatmul.mubr.bf16.gmra.mxu0 %v164
    %v200 = vpop.f32.mrf.mxu0
    %v201 = vadd.f32 %v133, %v200
    %v202 = vpop.f32.mrf.mxu0
    %v203 = vpop.f32.mrf.mxu0
    %v204 = vpop.f32.mrf.mxu0
    %205 = vdwg.mxu0
    %v206 = vmul.f32 %v201, %v147
    %v207 = vxor.u32 %v206, 2147483648
    %v208 = vmul.f32 %v207, 1.442695
    %v209 = vpow.pop %v208
    %v210 = vadd.f32 %v209, 1.0
    %v211 = vrcp.pop %v210
    %v212 = vmul.f32 1.0, %v211
    %v213 = vmul.f32 %v212, 2.0
    %v214 = vsub.f32 %v213, 1.0
    %v215 = vsel %vm146, %v214, %v212
    %v216 = vmul.f32 %v215, 0.0
    %218 = vrot.lane.b32.xlu0 %v215, 64
    %v219 = vpop.permute.xlu0 %218
    %v221 = vmul.f32 %v215, %v219
    %223 = vrot.lane.b32.xlu0 %v221, 32
    %v224 = vpop.permute.xlu0 %223
    %v226 = vadd.f32 %v216, %v224
    %v227 = vtanh.pop %v226
    %229 = vrot.lane.b32.xlu0 %v227, 64
    %v230 = vpop.permute.xlu0 %229
    %v232 = vmul.f32 %v215, %v230
    %vm233 = vcmp.eq.s32.totalorder %v149, 0
    %v234 = vlaneseq
    %v235 = vshrl.u32 %v234, 7
    %v236 = vsub.s32 0, %v235
    %v237 = vrot.slane %v232, %v236
    %v238 = vsel %vm233, %v237, 0.0
    %v239 = vpack.c.bf16 %v232, %v232
    %241 = vrot.lane.b32.xlu0 %v239, 32
    %v242 = vpop.permute.xlu0 %241
    %v244 = vrot.slane %v133, 1
    %v247 = vsel %vm162, %v242, 0
    %249 = vmatprep.subr.bf16.mxu0 0
    %250 = vmatpush1.bf16.msra.mxu0 0
    %251 = vmatprep.subr.bf16.mxu0 0
    %252 = vmatpush1.bf16.msra.mxu0 0
    %253 = vmatprep.subr.bf16.mxu0 0
    %254 = vmatpush1.bf16.msra.mxu0 0
    %255 = vmatprep.subr.bf16.mxu0 0
    %256 = vmatpush1.bf16.msra.mxu0 0
    %257 = vmatprep.subr.bf16.mxu0 0
    %258 = vmatpush1.bf16.msra.mxu0 0
    %259 = vmatprep.subr.bf16.mxu0 0
    %260 = vmatpush1.bf16.msra.mxu0 0
    %261 = vmatprep.subr.bf16.mxu0 0
    %262 = vmatpush1.bf16.msra.mxu0 %v159
    %263 = vmatprep.subr.bf16.mxu0 0
    %264 = vmatpush1.bf16.msra.mxu0 %v158
    %265 = vmatprep.subr.bf16.mxu0 0
    %266 = vmatpush2.bf16.msra.mxu0 0
    %267 = vmatprep.subr.bf16.mxu0 0
    %268 = vmatpush2.bf16.msra.mxu0 0
    %269 = vmatprep.subr.bf16.mxu0 0
    %270 = vmatpush2.bf16.msra.mxu0 0
    %271 = vmatprep.subr.bf16.mxu0 0
    %272 = vmatpush2.bf16.msra.mxu0 0
    %273 = vmatprep.subr.bf16.mxu0 0
    %274 = vmatpush2.bf16.msra.mxu0 0
    %275 = vmatprep.subr.bf16.mxu0 0
    %276 = vmatpush2.bf16.msra.mxu0 0
    %277 = vmatprep.subr.bf16.mxu0 0
    %278 = vmatpush2.bf16.msra.mxu0 0
    %279 = vmatprep.subr.bf16.mxu0 0
    %280 = vmatpush2.bf16.msra.mxu0 0
    %281 = vmatprep.mubr.bf16.mxu0 0
    %282 = vmatmul.mubr.bf16.gmra.mxu0 %v247
    %v283 = vpop.f32.mrf.mxu0
    %v284 = vadd.f32 %v244, %v283
    %v285 = vpop.f32.mrf.mxu0
    %v286 = vpop.f32.mrf.mxu0
    %v287 = vpop.f32.mrf.mxu0
    %288 = vdwg.mxu0
    %v289 = vmul.f32 %v284, %v147
    %v290 = vxor.u32 %v289, 2147483648
    %v291 = vmul.f32 %v290, 1.442695
    %v292 = vpow.pop %v291
    %v293 = vadd.f32 %v292, 1.0
    %v294 = vrcp.pop %v293
    %v295 = vmul.f32 1.0, %v294
    %v296 = vmul.f32 %v295, 2.0
    %v297 = vsub.f32 %v296, 1.0
    %v298 = vsel %vm146, %v297, %v295
    %v299 = vmul.f32 %v298, %v226
    %301 = vrot.lane.b32.xlu0 %v298, 64
    %v302 = vpop.permute.xlu0 %301
    %v304 = vmul.f32 %v298, %v302
    %306 = vrot.lane.b32.xlu0 %v304, 32
    %v307 = vpop.permute.xlu0 %306
    %v309 = vadd.f32 %v299, %v307
    %v310 = vtanh.pop %v309
    %312 = vrot.lane.b32.xlu0 %v310, 64
    %v313 = vpop.permute.xlu0 %312
    %v315 = vmul.f32 %v298, %v313
    %vm316 = vcmp.eq.s32.totalorder %v149, 1
    %v317 = vlaneseq
    %v318 = vshrl.u32 %v317, 7
    %v319 = vsub.s32 0, %v318
    %v320 = vrot.slane %v315, %v319
    %v321 = vsel %vm316, %v320, %v238
    %v322 = vpack.c.bf16 %v315, %v315
    %324 = vrot.lane.b32.xlu0 %v322, 32
    %v325 = vpop.permute.xlu0 %324
    %v326 = vrot.slane %v133, 2
    %v329 = vsel %vm162, %v325, 0
    %331 = vmatprep.subr.bf16.mxu0 0
    %332 = vmatpush1.bf16.msra.mxu0 0
    %333 = vmatprep.subr.bf16.mxu0 0
    %334 = vmatpush1.bf16.msra.mxu0 0
    %335 = vmatprep.subr.bf16.mxu0 0
    %336 = vmatpush1.bf16.msra.mxu0 0
    %337 = vmatprep.subr.bf16.mxu0 0
    %338 = vmatpush1.bf16.msra.mxu0 0
    %339 = vmatprep.subr.bf16.mxu0 0
    %340 = vmatpush1.bf16.msra.mxu0 0
    %341 = vmatprep.subr.bf16.mxu0 0
    %342 = vmatpush1.bf16.msra.mxu0 0
    %343 = vmatprep.subr.bf16.mxu0 0
    %344 = vmatpush1.bf16.msra.mxu0 %v159
    %345 = vmatprep.subr.bf16.mxu0 0
    %346 = vmatpush1.bf16.msra.mxu0 %v158
    %347 = vmatprep.subr.bf16.mxu0 0
    %348 = vmatpush2.bf16.msra.mxu0 0
    %349 = vmatprep.subr.bf16.mxu0 0
    %350 = vmatpush2.bf16.msra.mxu0 0
    %351 = vmatprep.subr.bf16.mxu0 0
    %352 = vmatpush2.bf16.msra.mxu0 0
    %353 = vmatprep.subr.bf16.mxu0 0
    %354 = vmatpush2.bf16.msra.mxu0 0
    %355 = vmatprep.subr.bf16.mxu0 0
    %356 = vmatpush2.bf16.msra.mxu0 0
    %357 = vmatprep.subr.bf16.mxu0 0
    %358 = vmatpush2.bf16.msra.mxu0 0
    %359 = vmatprep.subr.bf16.mxu0 0
    %360 = vmatpush2.bf16.msra.mxu0 0
    %361 = vmatprep.subr.bf16.mxu0 0
    %362 = vmatpush2.bf16.msra.mxu0 0
    %363 = vmatprep.mubr.bf16.mxu0 0
    %364 = vmatmul.mubr.bf16.gmra.mxu0 %v329
    %v365 = vpop.f32.mrf.mxu0
    %v366 = vadd.f32 %v326, %v365
    %v367 = vpop.f32.mrf.mxu0
    %v368 = vpop.f32.mrf.mxu0
    %v369 = vpop.f32.mrf.mxu0
    %370 = vdwg.mxu0
    %v371 = vmul.f32 %v366, %v147
    %v372 = vxor.u32 %v371, 2147483648
    %v373 = vmul.f32 %v372, 1.442695
    %v374 = vpow.pop %v373
    %v375 = vadd.f32 %v374, 1.0
    %v376 = vrcp.pop %v375
    %v377 = vmul.f32 1.0, %v376
    %v378 = vmul.f32 %v377, 2.0
    %v379 = vsub.f32 %v378, 1.0
    %v380 = vsel %vm146, %v379, %v377
    %v381 = vmul.f32 %v380, %v309
    %383 = vrot.lane.b32.xlu0 %v380, 64
    %v384 = vpop.permute.xlu0 %383
    %v386 = vmul.f32 %v380, %v384
    %388 = vrot.lane.b32.xlu0 %v386, 32
    %v389 = vpop.permute.xlu0 %388
    %v391 = vadd.f32 %v381, %v389
    %v392 = vtanh.pop %v391
    %394 = vrot.lane.b32.xlu0 %v392, 64
    %v395 = vpop.permute.xlu0 %394
    %v397 = vmul.f32 %v380, %v395
    %vm398 = vcmp.eq.s32.totalorder %v149, 2
    %v399 = vlaneseq
    %v400 = vshrl.u32 %v399, 7
    %v401 = vsub.s32 0, %v400
    %v402 = vrot.slane %v397, %v401
    %v403 = vsel %vm398, %v402, %v321
    %v404 = vpack.c.bf16 %v397, %v397
    %406 = vrot.lane.b32.xlu0 %v404, 32
    %v407 = vpop.permute.xlu0 %406
    %v408 = vrot.slane %v133, 3
    %v411 = vsel %vm162, %v407, 0
    %413 = vmatprep.subr.bf16.mxu0 0
    %414 = vmatpush1.bf16.msra.mxu0 0
    %415 = vmatprep.subr.bf16.mxu0 0
    %416 = vmatpush1.bf16.msra.mxu0 0
    %417 = vmatprep.subr.bf16.mxu0 0
    %418 = vmatpush1.bf16.msra.mxu0 0
    %419 = vmatprep.subr.bf16.mxu0 0
    %420 = vmatpush1.bf16.msra.mxu0 0
    %421 = vmatprep.subr.bf16.mxu0 0
    %422 = vmatpush1.bf16.msra.mxu0 0
    %423 = vmatprep.subr.bf16.mxu0 0
    %424 = vmatpush1.bf16.msra.mxu0 0
    %425 = vmatprep.subr.bf16.mxu0 0
    %426 = vmatpush1.bf16.msra.mxu0 %v159
    %427 = vmatprep.subr.bf16.mxu0 0
    %428 = vmatpush1.bf16.msra.mxu0 %v158
    %429 = vmatprep.subr.bf16.mxu0 0
    %430 = vmatpush2.bf16.msra.mxu0 0
    %431 = vmatprep.subr.bf16.mxu0 0
    %432 = vmatpush2.bf16.msra.mxu0 0
    %433 = vmatprep.subr.bf16.mxu0 0
    %434 = vmatpush2.bf16.msra.mxu0 0
    %435 = vmatprep.subr.bf16.mxu0 0
    %436 = vmatpush2.bf16.msra.mxu0 0
    %437 = vmatprep.subr.bf16.mxu0 0
    %438 = vmatpush2.bf16.msra.mxu0 0
    %439 = vmatprep.subr.bf16.mxu0 0
    %440 = vmatpush2.bf16.msra.mxu0 0
    %441 = vmatprep.subr.bf16.mxu0 0
    %442 = vmatpush2.bf16.msra.mxu0 0
    %443 = vmatprep.subr.bf16.mxu0 0
    %444 = vmatpush2.bf16.msra.mxu0 0
    %445 = vmatprep.mubr.bf16.mxu0 0
    %446 = vmatmul.mubr.bf16.gmra.mxu0 %v411
    %v447 = vpop.f32.mrf.mxu0
    %v448 = vadd.f32 %v408, %v447
    %v449 = vpop.f32.mrf.mxu0
    %v450 = vpop.f32.mrf.mxu0
    %v451 = vpop.f32.mrf.mxu0
    %452 = vdwg.mxu0
    %v453 = vmul.f32 %v448, %v147
    %v454 = vxor.u32 %v453, 2147483648
    %v455 = vmul.f32 %v454, 1.442695
    %v456 = vpow.pop %v455
    %v457 = vadd.f32 %v456, 1.0
    %v458 = vrcp.pop %v457
    %v459 = vmul.f32 1.0, %v458
    %v460 = vmul.f32 %v459, 2.0
    %v461 = vsub.f32 %v460, 1.0
    %v462 = vsel %vm146, %v461, %v459
    %v463 = vmul.f32 %v462, %v391
    %465 = vrot.lane.b32.xlu0 %v462, 64
    %v466 = vpop.permute.xlu0 %465
    %v468 = vmul.f32 %v462, %v466
    %470 = vrot.lane.b32.xlu0 %v468, 32
    %v471 = vpop.permute.xlu0 %470
    %v473 = vadd.f32 %v463, %v471
    %v474 = vtanh.pop %v473
    %476 = vrot.lane.b32.xlu0 %v474, 64
    %v477 = vpop.permute.xlu0 %476
    %v479 = vmul.f32 %v462, %v477
    %vm480 = vcmp.eq.s32.totalorder %v149, 3
    %v481 = vlaneseq
    %v482 = vshrl.u32 %v481, 7
    %v483 = vsub.s32 0, %v482
    %v484 = vrot.slane %v479, %v483
    %v485 = vsel %vm480, %v484, %v403
    %v486 = vpack.c.bf16 %v479, %v479
    %488 = vrot.lane.b32.xlu0 %v486, 32
    %v489 = vpop.permute.xlu0 %488
    %v490 = vrot.slane %v133, 4
    %v493 = vsel %vm162, %v489, 0
    %495 = vmatprep.subr.bf16.mxu0 0
    %496 = vmatpush1.bf16.msra.mxu0 0
    %497 = vmatprep.subr.bf16.mxu0 0
    %498 = vmatpush1.bf16.msra.mxu0 0
    %499 = vmatprep.subr.bf16.mxu0 0
    %500 = vmatpush1.bf16.msra.mxu0 0
    %501 = vmatprep.subr.bf16.mxu0 0
    %502 = vmatpush1.bf16.msra.mxu0 0
    %503 = vmatprep.subr.bf16.mxu0 0
    %504 = vmatpush1.bf16.msra.mxu0 0
    %505 = vmatprep.subr.bf16.mxu0 0
    %506 = vmatpush1.bf16.msra.mxu0 0
    %507 = vmatprep.subr.bf16.mxu0 0
    %508 = vmatpush1.bf16.msra.mxu0 %v159
    %509 = vmatprep.subr.bf16.mxu0 0
    %510 = vmatpush1.bf16.msra.mxu0 %v158
    %511 = vmatprep.subr.bf16.mxu0 0
    %512 = vmatpush2.bf16.msra.mxu0 0
    %513 = vmatprep.subr.bf16.mxu0 0
    %514 = vmatpush2.bf16.msra.mxu0 0
    %515 = vmatprep.subr.bf16.mxu0 0
    %516 = vmatpush2.bf16.msra.mxu0 0
    %517 = vmatprep.subr.bf16.mxu0 0
    %518 = vmatpush2.bf16.msra.mxu0 0
    %519 = vmatprep.subr.bf16.mxu0 0
    %520 = vmatpush2.bf16.msra.mxu0 0
    %521 = vmatprep.subr.bf16.mxu0 0
    %522 = vmatpush2.bf16.msra.mxu0 0
    %523 = vmatprep.subr.bf16.mxu0 0
    %524 = vmatpush2.bf16.msra.mxu0 0
    %525 = vmatprep.subr.bf16.mxu0 0
    %526 = vmatpush2.bf16.msra.mxu0 0
    %527 = vmatprep.mubr.bf16.mxu0 0
    %528 = vmatmul.mubr.bf16.gmra.mxu0 %v493
    %v529 = vpop.f32.mrf.mxu0
    %v530 = vadd.f32 %v490, %v529
    %v531 = vpop.f32.mrf.mxu0
    %v532 = vpop.f32.mrf.mxu0
    %v533 = vpop.f32.mrf.mxu0
    %534 = vdwg.mxu0
    %v535 = vmul.f32 %v530, %v147
    %v536 = vxor.u32 %v535, 2147483648
    %v537 = vmul.f32 %v536, 1.442695
    %v538 = vpow.pop %v537
    %v539 = vadd.f32 %v538, 1.0
    %v540 = vrcp.pop %v539
    %v541 = vmul.f32 1.0, %v540
    %v542 = vmul.f32 %v541, 2.0
    %v543 = vsub.f32 %v542, 1.0
    %v544 = vsel %vm146, %v543, %v541
    %v545 = vmul.f32 %v544, %v473
    %547 = vrot.lane.b32.xlu0 %v544, 64
    %v548 = vpop.permute.xlu0 %547
    %v550 = vmul.f32 %v544, %v548
    %552 = vrot.lane.b32.xlu0 %v550, 32
    %v553 = vpop.permute.xlu0 %552
    %v555 = vadd.f32 %v545, %v553
    %v556 = vtanh.pop %v555
    %558 = vrot.lane.b32.xlu0 %v556, 64
    %v559 = vpop.permute.xlu0 %558
    %v561 = vmul.f32 %v544, %v559
    %vm562 = vcmp.eq.s32.totalorder %v149, 4
    %v563 = vlaneseq
    %v564 = vshrl.u32 %v563, 7
    %v565 = vsub.s32 0, %v564
    %v566 = vrot.slane %v561, %v565
    %v567 = vsel %vm562, %v566, %v485
    %v568 = vpack.c.bf16 %v561, %v561
    %570 = vrot.lane.b32.xlu0 %v568, 32
    %v571 = vpop.permute.xlu0 %570
    %v572 = vrot.slane %v133, 5
    %v575 = vsel %vm162, %v571, 0
    %577 = vmatprep.subr.bf16.mxu0 0
    %578 = vmatpush1.bf16.msra.mxu0 0
    %579 = vmatprep.subr.bf16.mxu0 0
    %580 = vmatpush1.bf16.msra.mxu0 0
    %581 = vmatprep.subr.bf16.mxu0 0
    %582 = vmatpush1.bf16.msra.mxu0 0
    %583 = vmatprep.subr.bf16.mxu0 0
    %584 = vmatpush1.bf16.msra.mxu0 0
    %585 = vmatprep.subr.bf16.mxu0 0
    %586 = vmatpush1.bf16.msra.mxu0 0
    %587 = vmatprep.subr.bf16.mxu0 0
    %588 = vmatpush1.bf16.msra.mxu0 0
    %589 = vmatprep.subr.bf16.mxu0 0
    %590 = vmatpush1.bf16.msra.mxu0 %v159
    %591 = vmatprep.subr.bf16.mxu0 0
    %592 = vmatpush1.bf16.msra.mxu0 %v158
    %593 = vmatprep.subr.bf16.mxu0 0
    %594 = vmatpush2.bf16.msra.mxu0 0
    %595 = vmatprep.subr.bf16.mxu0 0
    %596 = vmatpush2.bf16.msra.mxu0 0
    %597 = vmatprep.subr.bf16.mxu0 0
    %598 = vmatpush2.bf16.msra.mxu0 0
    %599 = vmatprep.subr.bf16.mxu0 0
    %600 = vmatpush2.bf16.msra.mxu0 0
    %601 = vmatprep.subr.bf16.mxu0 0
    %602 = vmatpush2.bf16.msra.mxu0 0
    %603 = vmatprep.subr.bf16.mxu0 0
    %604 = vmatpush2.bf16.msra.mxu0 0
    %605 = vmatprep.subr.bf16.mxu0 0
    %606 = vmatpush2.bf16.msra.mxu0 0
    %607 = vmatprep.subr.bf16.mxu0 0
    %608 = vmatpush2.bf16.msra.mxu0 0
    %609 = vmatprep.mubr.bf16.mxu0 0
    %610 = vmatmul.mubr.bf16.gmra.mxu0 %v575
    %v611 = vpop.f32.mrf.mxu0
    %v612 = vadd.f32 %v572, %v611
    %v613 = vpop.f32.mrf.mxu0
    %v614 = vpop.f32.mrf.mxu0
    %v615 = vpop.f32.mrf.mxu0
    %616 = vdwg.mxu0
    %v617 = vmul.f32 %v612, %v147
    %v618 = vxor.u32 %v617, 2147483648
    %v619 = vmul.f32 %v618, 1.442695
    %v620 = vpow.pop %v619
    %v621 = vadd.f32 %v620, 1.0
    %v622 = vrcp.pop %v621
    %v623 = vmul.f32 1.0, %v622
    %v624 = vmul.f32 %v623, 2.0
    %v625 = vsub.f32 %v624, 1.0
    %v626 = vsel %vm146, %v625, %v623
    %v627 = vmul.f32 %v626, %v555
    %629 = vrot.lane.b32.xlu0 %v626, 64
    %v630 = vpop.permute.xlu0 %629
    %v632 = vmul.f32 %v626, %v630
    %634 = vrot.lane.b32.xlu0 %v632, 32
    %v635 = vpop.permute.xlu0 %634
    %v637 = vadd.f32 %v627, %v635
    %v638 = vtanh.pop %v637
    %640 = vrot.lane.b32.xlu0 %v638, 64
    %v641 = vpop.permute.xlu0 %640
    %v643 = vmul.f32 %v626, %v641
    %vm644 = vcmp.eq.s32.totalorder %v149, 5
    %v645 = vlaneseq
    %v646 = vshrl.u32 %v645, 7
    %v647 = vsub.s32 0, %v646
    %v648 = vrot.slane %v643, %v647
    %v649 = vsel %vm644, %v648, %v567
    %v650 = vpack.c.bf16 %v643, %v643
    %652 = vrot.lane.b32.xlu0 %v650, 32
    %v653 = vpop.permute.xlu0 %652
    %v654 = vrot.slane %v133, 6
    %v657 = vsel %vm162, %v653, 0
    %659 = vmatprep.subr.bf16.mxu0 0
    %660 = vmatpush1.bf16.msra.mxu0 0
    %661 = vmatprep.subr.bf16.mxu0 0
    %662 = vmatpush1.bf16.msra.mxu0 0
    %663 = vmatprep.subr.bf16.mxu0 0
    %664 = vmatpush1.bf16.msra.mxu0 0
    %665 = vmatprep.subr.bf16.mxu0 0
    %666 = vmatpush1.bf16.msra.mxu0 0
    %667 = vmatprep.subr.bf16.mxu0 0
    %668 = vmatpush1.bf16.msra.mxu0 0
    %669 = vmatprep.subr.bf16.mxu0 0
    %670 = vmatpush1.bf16.msra.mxu0 0
    %671 = vmatprep.subr.bf16.mxu0 0
    %672 = vmatpush1.bf16.msra.mxu0 %v159
    %673 = vmatprep.subr.bf16.mxu0 0
    %674 = vmatpush1.bf16.msra.mxu0 %v158
    %675 = vmatprep.subr.bf16.mxu0 0
    %676 = vmatpush2.bf16.msra.mxu0 0
    %677 = vmatprep.subr.bf16.mxu0 0
    %678 = vmatpush2.bf16.msra.mxu0 0
    %679 = vmatprep.subr.bf16.mxu0 0
    %680 = vmatpush2.bf16.msra.mxu0 0
    %681 = vmatprep.subr.bf16.mxu0 0
    %682 = vmatpush2.bf16.msra.mxu0 0
    %683 = vmatprep.subr.bf16.mxu0 0
    %684 = vmatpush2.bf16.msra.mxu0 0
    %685 = vmatprep.subr.bf16.mxu0 0
    %686 = vmatpush2.bf16.msra.mxu0 0
    %687 = vmatprep.subr.bf16.mxu0 0
    %688 = vmatpush2.bf16.msra.mxu0 0
    %689 = vmatprep.subr.bf16.mxu0 0
    %690 = vmatpush2.bf16.msra.mxu0 0
    %691 = vmatprep.mubr.bf16.mxu0 0
    %692 = vmatmul.mubr.bf16.gmra.mxu0 %v657
    %v693 = vpop.f32.mrf.mxu0
    %v694 = vadd.f32 %v654, %v693
    %v695 = vpop.f32.mrf.mxu0
    %v696 = vpop.f32.mrf.mxu0
    %v697 = vpop.f32.mrf.mxu0
    %698 = vdwg.mxu0
    %v699 = vmul.f32 %v694, %v147
    %v700 = vxor.u32 %v699, 2147483648
    %v701 = vmul.f32 %v700, 1.442695
    %v702 = vpow.pop %v701
    %v703 = vadd.f32 %v702, 1.0
    %v704 = vrcp.pop %v703
    %v705 = vmul.f32 1.0, %v704
    %v706 = vmul.f32 %v705, 2.0
    %v707 = vsub.f32 %v706, 1.0
    %v708 = vsel %vm146, %v707, %v705
    %v709 = vmul.f32 %v708, %v637
    %711 = vrot.lane.b32.xlu0 %v708, 64
    %v712 = vpop.permute.xlu0 %711
    %v714 = vmul.f32 %v708, %v712
    %716 = vrot.lane.b32.xlu0 %v714, 32
    %v717 = vpop.permute.xlu0 %716
    %v719 = vadd.f32 %v709, %v717
    %v720 = vtanh.pop %v719
    %722 = vrot.lane.b32.xlu0 %v720, 64
    %v723 = vpop.permute.xlu0 %722
    %v725 = vmul.f32 %v708, %v723
    %vm726 = vcmp.eq.s32.totalorder %v149, 6
    %v727 = vlaneseq
    %v728 = vshrl.u32 %v727, 7
    %v729 = vsub.s32 0, %v728
    %v730 = vrot.slane %v725, %v729
    %v731 = vsel %vm726, %v730, %v649
    %v732 = vpack.c.bf16 %v725, %v725
    %734 = vrot.lane.b32.xlu0 %v732, 32
    %v735 = vpop.permute.xlu0 %734
    %v736 = vrot.slane %v133, 7
    %v739 = vsel %vm162, %v735, 0
    %741 = vmatprep.subr.bf16.mxu0 0
    %742 = vmatpush1.bf16.msra.mxu0 0
    %743 = vmatprep.subr.bf16.mxu0 0
    %744 = vmatpush1.bf16.msra.mxu0 0
    %745 = vmatprep.subr.bf16.mxu0 0
    %746 = vmatpush1.bf16.msra.mxu0 0
    %747 = vmatprep.subr.bf16.mxu0 0
    %748 = vmatpush1.bf16.msra.mxu0 0
    %749 = vmatprep.subr.bf16.mxu0 0
    %750 = vmatpush1.bf16.msra.mxu0 0
    %751 = vmatprep.subr.bf16.mxu0 0
    %752 = vmatpush1.bf16.msra.mxu0 0
    %753 = vmatprep.subr.bf16.mxu0 0
    %754 = vmatpush1.bf16.msra.mxu0 %v159
    %755 = vmatprep.subr.bf16.mxu0 0
    %756 = vmatpush1.bf16.msra.mxu0 %v158
    %757 = vmatprep.subr.bf16.mxu0 0
    %758 = vmatpush2.bf16.msra.mxu0 0
    %759 = vmatprep.subr.bf16.mxu0 0
    %760 = vmatpush2.bf16.msra.mxu0 0
    %761 = vmatprep.subr.bf16.mxu0 0
    %762 = vmatpush2.bf16.msra.mxu0 0
    %763 = vmatprep.subr.bf16.mxu0 0
    %764 = vmatpush2.bf16.msra.mxu0 0
    %765 = vmatprep.subr.bf16.mxu0 0
    %766 = vmatpush2.bf16.msra.mxu0 0
    %767 = vmatprep.subr.bf16.mxu0 0
    %768 = vmatpush2.bf16.msra.mxu0 0
    %769 = vmatprep.subr.bf16.mxu0 0
    %770 = vmatpush2.bf16.msra.mxu0 0
    %771 = vmatprep.subr.bf16.mxu0 0
    %772 = vmatpush2.bf16.msra.mxu0 0
    %773 = vmatprep.mubr.bf16.mxu0 0
    %774 = vmatmul.mubr.bf16.gmra.mxu0 %v739
    %v775 = vpop.f32.mrf.mxu0
    %v776 = vadd.f32 %v736, %v775
    %v777 = vpop.f32.mrf.mxu0
    %v778 = vpop.f32.mrf.mxu0
    %v779 = vpop.f32.mrf.mxu0
    %780 = vdwg.mxu0
    %v781 = vmul.f32 %v776, %v147
    %v782 = vxor.u32 %v781, 2147483648
    %v783 = vmul.f32 %v782, 1.442695
    %v784 = vpow.pop %v783
    %v785 = vadd.f32 %v784, 1.0
    %v786 = vrcp.pop %v785
    %v787 = vmul.f32 1.0, %v786
    %v788 = vmul.f32 %v787, 2.0
    %v789 = vsub.f32 %v788, 1.0
    %v790 = vsel %vm146, %v789, %v787
    %v791 = vmul.f32 %v790, %v719
    %793 = vrot.lane.b32.xlu0 %v790, 64
    %v794 = vpop.permute.xlu0 %793
    %v796 = vmul.f32 %v790, %v794
    %798 = vrot.lane.b32.xlu0 %v796, 32
    %v799 = vpop.permute.xlu0 %798
    %v801 = vadd.f32 %v791, %v799
    %v802 = vtanh.pop %v801
    %804 = vrot.lane.b32.xlu0 %v802, 64
    %v805 = vpop.permute.xlu0 %804
    %v807 = vmul.f32 %v790, %v805
    %vm808 = vcmp.eq.s32.totalorder %v149, 7
    %v809 = vlaneseq
    %v810 = vshrl.u32 %v809, 7
    %v811 = vsub.s32 0, %v810
    %v812 = vrot.slane %v807, %v811
    %v813 = vsel %vm808, %v812, %v731
    %v814 = vpack.c.bf16 %v813, %v813
    %v815 = vld [vmem:[#allocation8] sm:$0xf]
    %v816 = vld [vmem:[#allocation8 + $0x4] sm:$0xf]
    %v817 = vld [vmem:[#allocation8 + $0x8] sm:$0xf]
    %v818 = vld [vmem:[#allocation8 + $0xc] sm:$0xf]
    %v819 = vld [vmem:[%s5] sm:$0x1]
    %v821 = vlaneseq
    %v822 = vshrl.u32 %v821, 7
    %v823 = vsub.s32 0, %v822
    %v824 = vrot.slane %v819, %v823
    %827 = vrot.lane.b32.xlu0 %v814, 32
    %v828 = vpop.permute.xlu0 %827
    %v833 = vunpack.c.l.b16 %v815
    %v834 = vunpack.c.l.b16 %v816
    %v835 = vunpack.c.l.b16 %v817
    %v836 = vunpack.c.l.b16 %v818
    %v837 = vpack.c.b16 %v834, %v833
    %v838 = vpack.c.b16 %v836, %v835
    %v842 = vsel %vm162, %v828, 0
    %844 = vmatprep.subr.bf16.mxu0 0
    %845 = vmatpush1.bf16.msra.mxu0 0
    %846 = vmatprep.subr.bf16.mxu0 0
    %847 = vmatpush1.bf16.msra.mxu0 0
    %848 = vmatprep.subr.bf16.mxu0 0
    %849 = vmatpush1.bf16.msra.mxu0 0
    %850 = vmatprep.subr.bf16.mxu0 0
    %851 = vmatpush1.bf16.msra.mxu0 0
    %852 = vmatprep.subr.bf16.mxu0 0
    %853 = vmatpush1.bf16.msra.mxu0 0
    %854 = vmatprep.subr.bf16.mxu0 0
    %855 = vmatpush1.bf16.msra.mxu0 0
    %856 = vmatprep.subr.bf16.mxu0 0
    %857 = vmatpush1.bf16.msra.mxu0 %v838
    %858 = vmatprep.subr.bf16.mxu0 0
    %859 = vmatpush1.bf16.msra.mxu0 %v837
    %860 = vmatprep.subr.bf16.mxu0 0
    %861 = vmatpush2.bf16.msra.mxu0 0
    %862 = vmatprep.subr.bf16.mxu0 0
    %863 = vmatpush2.bf16.msra.mxu0 0
    %864 = vmatprep.subr.bf16.mxu0 0
    %865 = vmatpush2.bf16.msra.mxu0 0
    %866 = vmatprep.subr.bf16.mxu0 0
    %867 = vmatpush2.bf16.msra.mxu0 0
    %868 = vmatprep.subr.bf16.mxu0 0
    %869 = vmatpush2.bf16.msra.mxu0 0
    %870 = vmatprep.subr.bf16.mxu0 0
    %871 = vmatpush2.bf16.msra.mxu0 0
    %872 = vmatprep.subr.bf16.mxu0 0
    %873 = vmatpush2.bf16.msra.mxu0 0
    %874 = vmatprep.subr.bf16.mxu0 0
    %875 = vmatpush2.bf16.msra.mxu0 0
    %876 = vmatprep.mubr.bf16.mxu0 0
    %877 = vmatmul.mubr.bf16.gmra.mxu0 %v842
    %v878 = vpop.f32.mrf.mxu0
    %v879 = vadd.f32 %v824, %v878
    %v880 = vpop.f32.mrf.mxu0
    %v881 = vpop.f32.mrf.mxu0
    %v882 = vpop.f32.mrf.mxu0
    %883 = vdwg.mxu0
    %884 = vst.msk [vmem:[#allocation10] sm:$0xff] %vm162, %v879
    // Predicated region
    $region42: #{tpu_custom_call.1} parent=1 // pred_check
      _
    $region43: #{tpu_custom_call.1} parent=1 // pred_check_branch
      %886 = sbr.rel (0) target = $region45
    $region44: #{tpu_custom_call.1} parent=1 // pred_region
      %s888 = ssub.s32 128, 128
      %889 = vsyncadd [#allocation4], %s888
      %s891 = sshll.u32 [#allocation10], 4
      %s892 = int_to_ptr.vmem [resolvable:$true] %s891
      %894 = dma.vmem_to_hbm [thread:$0]  %s892, 128, %s6, [#allocation4]
    $region45: #{tpu_custom_call.1} parent=1 // pred_fallthru
      _
    // Predicated region
    $region46: #{tpu_custom_call.1} parent=1 // pred_check
      _
    $region47: #{tpu_custom_call.1} parent=1 // pred_check_branch
      %896 = sbr.rel (0) target = $region49
    $region48: #{tpu_custom_call.1} parent=1 // pred_region
      %897 = dma.done [#allocation4], 128
    $region49: #{tpu_custom_call.1} parent=1 // pred_fallthru
      _
    %898 = vsyncpa [#allocation3], 1
    %899 = vsyncpa [#allocation6], 1
    %900 = vsyncpa [#allocation9], 1
    %901 = vsyncpa [#allocation4], 1

</llo_original>
